<compile_context>
chip_gen: v5e
topology: v5e:2x2
jax: 0.10.0
libtpu: 0.0.40
codegen_flags: <defaults>
</compile_context>

<pallas_src>
import jax
import jax.numpy as jnp
from jax.experimental import pallas as pl
from jax.experimental.pallas import tpu as pltpu

_SUBLANE = 8
_LANE = 128
# 256K tokens per tile -> lanes per tile = 32768:
#   x tile  (3, 8, 32768) f32 = 3 MiB, out tile (8, 32768) f32 = 1 MiB
#   double-buffered total ~8 MiB, HBM traffic ~4 MiB / grid step.
_MAX_TILE_LANES = 32768


def _round_up(x, m):
    return ((x + m - 1) // m) * m


def _linear_fma_kernel(wb_ref, x_ref, o_ref):
    """o[s, l] = wb[D] + sum_k wb[k] * x[k, s, l]   (full-vreg VPU FMA, no MXU).

    wb_ref: SMEM (D+1,) f32 -- [w_0 .. w_{D-1}, b].
    x_ref : VMEM (D, 8, TL) f32 -- tokens on (sublane, lane); full (8,128) vregs.
    o_ref : VMEM (8, TL) f32   -- full-width, unmasked stores.
    """
    d = x_ref.shape[0]
    acc = jnp.full(o_ref.shape, wb_ref[d], dtype=jnp.float32)  # bias broadcast
    for k in range(d):  # d is static (=3) -> fully unrolled VPU FMAs
        acc = acc + wb_ref[k] * x_ref[k]
    o_ref[...] = acc


def _pre_linear_lane_dense(x3, wb, *, tile_lanes, grid_n):
    """x3: (D, 8, lanes) f32, wb: (D+1,) f32  ->  (8, lanes) f32."""
    d, s, lanes = x3.shape
    return pl.pallas_call(
        _linear_fma_kernel,
        out_shape=jax.ShapeDtypeStruct((s, lanes), jnp.float32),
        grid=(grid_n,),
        in_specs=[
            # 16 bytes of weights+bias live in SMEM, untiled.
            pl.BlockSpec(memory_space=pltpu.MemorySpace.SMEM),
            # Last two block dims: 8 (= full dim) and tile_lanes (multiple of
            # 128, or the full lane extent for small inputs).
            pl.BlockSpec((d, s, tile_lanes), lambda i: (0, 0, i)),
        ],
        out_specs=pl.BlockSpec((s, tile_lanes), lambda i: (0, i)),
        compiler_params=pltpu.CompilerParams(
            # Independent token tiles: shard across TensorCores on megacore /
            # multi-TC parts (v7x).
            dimension_semantics=("parallel",),
            # ~8 MiB double-buffered footprint; 32 MiB limit gives headroom and
            # stays well under v7x's 64 MiB per-TC physical VMEM.
            vmem_limit_bytes=32 * 1024 * 1024,
        ),
    )(wb, x3)


@jax.jit
def moe_model_level_forward(batch_data, weight, bias):
    """Equivalent of MoE_model_level.forward: y = batch_data @ weight.T + bias."""
    orig_shape = batch_data.shape
    d = orig_shape[-1]
    x = batch_data.reshape(-1, d).astype(jnp.float32)          # (N, D)
    n = x.shape[0]

    # Pad tokens only up to the sublane multiple (8); no tile-granular padding.
    n_pad = _round_up(max(n, 1), _SUBLANE)

    # Feature-major layout (separate XLA transpose pass; see header note).
    x_lane = x.T                                               # (D, N)
    if n_pad != n:
        x_lane = jnp.pad(x_lane, ((0, 0), (0, n_pad - n)))     # (D, N_pad)

    lanes = n_pad // _SUBLANE
    x3 = x_lane.reshape(d, _SUBLANE, lanes)                    # free row-major reshape

    # Tile the lane axis; ragged last block handled by Pallas masking.
    tile_lanes = lanes if lanes <= _MAX_TILE_LANES else _MAX_TILE_LANES
    grid_n = pl.cdiv(lanes, tile_lanes)

    wb = jnp.concatenate(
        [weight.reshape(-1).astype(jnp.float32),
         bias.reshape(-1).astype(jnp.float32)]
    )                                                          # (D+1,)

    y3 = _pre_linear_lane_dense(x3, wb, tile_lanes=tile_lanes, grid_n=grid_n)
    y = y3.reshape(n_pad)[:n].reshape(*orig_shape[:-1], 1)     # free reshape + slice
    return y


class MoEModelLevelPallas:
    """JAX/Pallas equivalent of MoE_model_level (forward == pre_linears only)."""

    def __init__(self, key):
        # nn.Linear(3, 1): weight (1, 3), bias (1,), init U(-1/sqrt(3), 1/sqrt(3))
        in_features = 3
        bound = 1.0 / (in_features ** 0.5)
        kw, kb = jax.random.split(key)
        self.weight = jax.random.uniform(
            kw, (1, in_features), jnp.float32, minval=-bound, maxval=bound)
        self.bias = jax.random.uniform(
            kb, (1,), jnp.float32, minval=-bound, maxval=bound)

    def __call__(self, batch_data):
        return moe_model_level_forward(batch_data, self.weight, self.bias)


if __name__ == "__main__":
    key = jax.random.PRNGKey(0)
    k_param, k_d1, k_d2, k_d3 = jax.random.split(key, 4)

    model = MoEModelLevelPallas(k_param)

    # Small input consistent with the module: last dim must be 3.
    batch_data = jax.random.normal(k_d1, (2, 8, 3), dtype=jnp.float32)
    out = jax.block_until_ready(model(batch_data))
    ref = batch_data @ model.weight.T + model.bias
    assert out.shape == (2, 8, 1), out.shape
    assert jnp.allclose(out, ref, atol=1e-5, rtol=1e-5), "mismatch vs reference"

    # Token count not a multiple of the sublane/lane tiling (exercises padding).
    batch_data2 = jax.random.normal(k_d2, (3, 300, 3), dtype=jnp.float32)
    out2 = jax.block_until_ready(model(batch_data2))
    ref2 = batch_data2 @ model.weight.T + model.bias
    assert out2.shape == (3, 300, 1), out2.shape
    assert jnp.allclose(out2, ref2, atol=1e-5, rtol=1e-5), "mismatch (padded)"

    # Moderate size to exercise the multi-block grid + ragged last block path
    # (N = 257*1024 tokens -> lanes = 32896 -> grid of 2, last block partial).
    batch_data3 = jax.random.normal(k_d3, (257, 1024, 3), dtype=jnp.float32)
    out3 = jax.block_until_ready(model(batch_data3))
    ref3 = batch_data3 @ model.weight.T + model.bias
    assert out3.shape == (257, 1024, 1), out3.shape
    assert jnp.allclose(out3, ref3, atol=1e-5, rtol=1e-5), "mismatch (multi-block)"

    print("KERNEL_OK")
</pallas_src>

<mosaic_0001>
module attributes {stable_mosaic.version = 11 : i64} {
  func.func @_linear_fma_kernel(%arg0: i32, %arg1: memref<4xf32, #tpu.memory_space<smem>>, %arg2: memref<3x8x2xf32, #tpu.memory_space<vmem>>, %arg3: memref<8x2xf32, #tpu.memory_space<vmem>>) attributes {dimension_semantics = [#tpu.dimension_semantics<parallel>], iteration_bounds = array<i64: 1>, scalar_prefetch = 0 : i64, scratch_operands = 0 : i64, tpu.core_type = #tpu.core_type<tc>, window_params = [{transform_indices = @transform_0, window_bounds = array<i64: 4>}, {transform_indices = @transform_1, window_bounds = array<i64: 3, 8, 2>}, {transform_indices = @transform_2, window_bounds = array<i64: 8, 2>}]} {
    %c3 = arith.constant 3 : index
    %0 = memref.load %arg1[%c3] : memref<4xf32, #tpu.memory_space<smem>>
    %1 = vector.broadcast %0 : f32 to vector<8x2xf32>
    %c0 = arith.constant 0 : index
    %2 = memref.load %arg1[%c0] : memref<4xf32, #tpu.memory_space<smem>>
    %c0_0 = arith.constant 0 : index
    %c0_1 = arith.constant 0 : index
    %c0_2 = arith.constant 0 : index
    %3 = vector.load %arg2[%c0_0, %c0_1, %c0_2] : memref<3x8x2xf32, #tpu.memory_space<vmem>>, vector<1x8x2xf32>
    %4 = vector.shape_cast %3 : vector<1x8x2xf32> to vector<8x2xf32>
    %5 = vector.broadcast %2 : f32 to vector<8x2xf32>
    %6 = arith.mulf %5, %4 : vector<8x2xf32>
    %7 = arith.addf %1, %6 : vector<8x2xf32>
    %c1 = arith.constant 1 : index
    %8 = memref.load %arg1[%c1] : memref<4xf32, #tpu.memory_space<smem>>
    %c1_3 = arith.constant 1 : index
    %c0_4 = arith.constant 0 : index
    %c0_5 = arith.constant 0 : index
    %9 = vector.load %arg2[%c1_3, %c0_4, %c0_5] : memref<3x8x2xf32, #tpu.memory_space<vmem>>, vector<1x8x2xf32>
    %10 = vector.shape_cast %9 : vector<1x8x2xf32> to vector<8x2xf32>
    %11 = vector.broadcast %8 : f32 to vector<8x2xf32>
    %12 = arith.mulf %11, %10 : vector<8x2xf32>
    %13 = arith.addf %7, %12 : vector<8x2xf32>
    %c2 = arith.constant 2 : index
    %14 = memref.load %arg1[%c2] : memref<4xf32, #tpu.memory_space<smem>>
    %c2_6 = arith.constant 2 : index
    %c0_7 = arith.constant 0 : index
    %c0_8 = arith.constant 0 : index
    %15 = vector.load %arg2[%c2_6, %c0_7, %c0_8] : memref<3x8x2xf32, #tpu.memory_space<vmem>>, vector<1x8x2xf32>
    %16 = vector.shape_cast %15 : vector<1x8x2xf32> to vector<8x2xf32>
    %17 = vector.broadcast %14 : f32 to vector<8x2xf32>
    %18 = arith.mulf %17, %16 : vector<8x2xf32>
    %19 = arith.addf %13, %18 : vector<8x2xf32>
    %c0_9 = arith.constant 0 : index
    %c0_10 = arith.constant 0 : index
    %20 = vector.load %arg3[%c0_9, %c0_10] : memref<8x2xf32, #tpu.memory_space<vmem>>, vector<8x2xf32>
    tpu.vector_store %arg3[%c0_9, %c0_10], %19 {strides = array<i32>} : memref<8x2xf32, #tpu.memory_space<vmem>>, vector<8x2xf32>,
    return
  }
  func.func @transform_0(%arg0: i32) -> i32 {
    %c0_i32 = arith.constant 0 : i32
    %c0_i32_0 = arith.constant 0 : i32
    return %c0_i32 : i32
  }
  func.func @transform_1(%arg0: i32) -> (i32, i32, i32) {
    %c0_i32 = arith.constant 0 : i32
    %c0_i32_0 = arith.constant 0 : i32
    %c0_i32_1 = arith.constant 0 : i32
    return %c0_i32, %c0_i32_0, %arg0 : i32, i32, i32
  }
  func.func @transform_2(%arg0: i32) -> (i32, i32) {
    %c0_i32 = arith.constant 0 : i32
    %c0_i32_0 = arith.constant 0 : i32
    return %c0_i32, %arg0 : i32, i32
  }
}

</mosaic_0001>

<llo_original>
// kernel: moe_model_level_forward.1
$region0: #{moe_model_level_forward.1}
  #allocation0 [shape = 'u32[]', space=smem, size = 0x4, offset = 0x4, fixed_abs, tag = 'smem constant byte address 0x4 - core index']
  #allocation1 [shape = 'u32[72,128]{1,0:T(1,128)}', space=vmem, size = 0x9000, scoped, tag = 'internal scratch']
  %s0 = inlined_call_operand.vmem [shape: f32[4], index: 0, kind: input, shape index: {}]
  %s1 = inlined_call_operand.vmem [shape: f32[3,8,2], index: 1, kind: input, shape index: {}]
  %s2 = inlined_call_operand.vmem [shape: f32[8,2], index: 2, kind: output, shape index: {}]
  %s3 = sld [smem:[#allocation0]]
  $region22: #{moe_model_level_forward.1} parent=0
    _
  %s5 = ssub.s32 1, %s3
  %s6 = scalar_select 0, %s5, %s3
  $region1: #{moe_model_level_forward.1} parent=0
    #allocation2 [shape = 'u8[512]{0}', space=smem, size = 0x200, scoped, tag = 'input window, operand 0, single buffered']
    #allocation3 [shape = 's32[1]{0}', space=sflag, size = 0x4, scoped, tag = 'scoped memory for moe_model_level_forward.1']
    %7 = vsyncpa [#allocation3], 0
    // Predicated region
    $region2: #{moe_model_level_forward.1} parent=1 // pred_check
      _
    $region3: #{moe_model_level_forward.1} parent=1 // pred_check_branch
      %9 = sbr.rel (0) target = $region5
    $region4: #{moe_model_level_forward.1} parent=1 // pred_region
      %11 = vsyncadd [#allocation3], 0
      %s13 = sshll.u32 %s0, 4
      %s14 = int_to_ptr.vmem [resolvable:$true] %s13
      %16 = dma.vmem_to_smem %s14, 16, [#allocation2], [#allocation3]
    $region5: #{moe_model_level_forward.1} parent=1 // pred_fallthru
      _
    // Predicated region
    $region6: #{moe_model_level_forward.1} parent=1 // pred_check
      _
    $region7: #{moe_model_level_forward.1} parent=1 // pred_check_branch
      %18 = sbr.rel (0) target = $region9
    $region8: #{moe_model_level_forward.1} parent=1 // pred_region
      _
    $region9: #{moe_model_level_forward.1} parent=1 // pred_fallthru
      _
    // Predicated region
    $region10: #{moe_model_level_forward.1} parent=1 // pred_check
      _
    $region11: #{moe_model_level_forward.1} parent=1 // pred_check_branch
      %20 = sbr.rel (0) target = $region13
    $region12: #{moe_model_level_forward.1} parent=1 // pred_region
      %22 = dma.done [#allocation3], 16
    $region13: #{moe_model_level_forward.1} parent=1 // pred_fallthru
      _
    %23 = sfence
    %s24 = sld [smem:[#allocation2 + $0x3]]
    %v25 = vstv %s24
    %s26 = sld [smem:[#allocation2]]
    %v27 = vld [vmem:[%s1] sm:$0xff]
    %v28 = vstv %s26
    %v29 = vmul.f32 %v28, %v27
    %v30 = vadd.f32 %v25, %v29
    %s31 = sld [smem:[#allocation2 + $0x1]]
    %s32 = scalar_lea.vmem %s1, 8
    %v33 = vld [vmem:[%s32] sm:$0xff]
    %v34 = vstv %s31
    %v35 = vmul.f32 %v34, %v33
    %v36 = vadd.f32 %v30, %v35
    %s37 = sld [smem:[#allocation2 + $0x2]]
    %s38 = scalar_lea.vmem %s1, 16
    %v39 = vld [vmem:[%s38] sm:$0xff]
    %v40 = vstv %s37
    %v41 = vmul.f32 %v40, %v39
    %v42 = vadd.f32 %v36, %v41
    %vm43 = vcmask 15360
    %44 = vst.msk [vmem:[%s2] sm:$0xff] %vm43, %v42
    // Predicated region
    $region14: #{moe_model_level_forward.1} parent=1 // pred_check
      _
    $region15: #{moe_model_level_forward.1} parent=1 // pred_check_branch
      %46 = sbr.rel (0) target = $region17
    $region16: #{moe_model_level_forward.1} parent=1 // pred_region
      _
    $region17: #{moe_model_level_forward.1} parent=1 // pred_fallthru
      _
    // Predicated region
    $region18: #{moe_model_level_forward.1} parent=1 // pred_check
      _
    $region19: #{moe_model_level_forward.1} parent=1 // pred_check_branch
      %48 = sbr.rel (0) target = $region21
    $region20: #{moe_model_level_forward.1} parent=1 // pred_region
      _
    $region21: #{moe_model_level_forward.1} parent=1 // pred_fallthru
      _
    %49 = vsyncpa [#allocation3], 1

</llo_original>
